<compile_context>
chip_gen: v6e
topology: v6e:2x2x1
jax: 0.10.0
libtpu: 0.0.40
codegen_flags: <defaults>
</compile_context>

<pallas_src>
import functools

import jax
import jax.numpy as jnp
from jax.experimental import pallas as pl
from jax.experimental.pallas import tpu as pltpu

_SUBLANE = 8          # batch-row rounding target (vreg sublane width)
_MIN_SPLIT_ROWS = 512 # above this many rows, force grid >= 2 (v7x 2-TC sharding)


def _round_up(n: int, m: int) -> int:
    return ((n + m - 1) // m) * m


def _fused_mlp_kernel(*refs, num_layers: int):
    """Whole-MLP fused kernel for one batch tile.

    refs = (x_ref, w0_ref, b0_ref, w1_ref, b1_ref, ..., o_ref)
      x_ref : (TB, D0)      VMEM
      wi_ref: (Di, Di+1)    VMEM (constant block -> resident across grid steps)
      bi_ref: (1, Di+1)     VMEM
      o_ref : (TB, D_last)  VMEM (single store per tile)
    """
    x_ref = refs[0]
    o_ref = refs[-1]

    y = x_ref[...]
    for i in range(num_layers):
        w_ref = refs[1 + 2 * i]
        b_ref = refs[2 + 2 * i]
        # MXU operands in the weights' dtype (fast path for bf16 params);
        # accumulate in f32 via preferred_element_type.
        y = jnp.dot(y.astype(w_ref.dtype), w_ref[...],
                    preferred_element_type=jnp.float32)
        y = y + b_ref[...].astype(jnp.float32)   # (1, Dout) broadcasts
        if i < num_layers - 1:
            y = jnp.maximum(y, 0.0)               # ReLU on all but last layer
    o_ref[...] = y.astype(o_ref.dtype)


def mlp_forward(x, params, *, batch_tile: int = 512):
    """Full MLP forward in a single pallas_call.

    x: (..., input_dim); params: list of (W_t, b) with W_t of shape (in, out).
    """
    num_layers = len(params)
    orig_shape = x.shape
    in_dim = orig_shape[-1]
    out_dim = params[-1][0].shape[1]

    x2d = x.reshape(-1, in_dim)
    batch = x2d.shape[0]

    # Batch tiling: tb must be a multiple of 8 (sublane rule).  Only the batch
    # axis is padded; feature dims stay at their true sizes.
    rows = _round_up(batch, _SUBLANE)
    tb = min(_round_up(batch_tile, _SUBLANE), rows)
    if rows >= _MIN_SPLIT_ROWS and tb >= rows:
        # Large batch in a single tile -> split into >= 2 grid steps so the
        # "parallel" axis can shard across v7x's two TensorCores.
        tb = _round_up(-(-rows // 2), _SUBLANE)
    batch_pad = _round_up(rows, tb)

    x_p = jnp.pad(x2d, ((0, batch_pad - batch), (0, 0)))

    dims = [in_dim] + [w.shape[1] for (w, _) in params]

    flat_inputs = [x_p]
    in_specs = [pl.BlockSpec((tb, in_dim), lambda i: (i, 0))]
    for li, (w, b) in enumerate(params):
        din, dout = dims[li], dims[li + 1]
        assert w.shape == (din, dout) and b.shape == (dout,)
        flat_inputs += [w, b.reshape(1, dout)]
        # Constant block index -> weights/biases stay VMEM-resident across the
        # batch grid; block dims equal full array dims (legal, no padding).
        in_specs += [
            pl.BlockSpec((din, dout), lambda i: (0, 0)),
            pl.BlockSpec((1, dout), lambda i: (0, 0)),
        ]

    # Advisory cost estimate for XLA's scheduler.
    itemsize = x.dtype.itemsize
    flops = 2 * batch_pad * sum(dims[i] * dims[i + 1] for i in range(num_layers))
    bytes_accessed = (
        batch_pad * in_dim * itemsize
        + batch_pad * out_dim * itemsize
        + sum(w.size * w.dtype.itemsize + b.size * b.dtype.itemsize
              for (w, b) in params)
    )

    kernel = functools.partial(_fused_mlp_kernel, num_layers=num_layers)
    out_p = pl.pallas_call(
        kernel,
        out_shape=jax.ShapeDtypeStruct((batch_pad, out_dim), x.dtype),
        grid=(batch_pad // tb,),
        in_specs=in_specs,
        out_specs=pl.BlockSpec((tb, out_dim), lambda i: (i, 0)),
        compiler_params=pltpu.CompilerParams(
            dimension_semantics=("parallel",),
        ),
        cost_estimate=pl.CostEstimate(
            flops=int(flops),
            transcendentals=0,
            bytes_accessed=int(bytes_accessed),
        ),
    )(*flat_inputs)

    out = out_p[:batch, :]
    return out.reshape(orig_shape[:-1] + (out_dim,))


def init_mlp_params(key, input_dim, hidden_dim, output_dim, num_layers,
                    dtype=jnp.float32):
    """Deterministic init matching nn.Linear shapes.

    Returns list of (W_t, b) where W_t has shape (in, out) — the transpose of
    PyTorch's (out, in) weight — ready for x @ W_t + b.
    """
    h = [hidden_dim] * (num_layers - 1)
    dims_in = [input_dim] + h
    dims_out = h + [output_dim]
    params = []
    for n, k in zip(dims_in, dims_out):
        key, k1, k2 = jax.random.split(key, 3)
        bound = 1.0 / jnp.sqrt(n)  # same scale as nn.Linear default init
        w = jax.random.uniform(k1, (n, k), dtype, minval=-bound, maxval=bound)
        b = jax.random.uniform(k2, (k,), dtype, minval=-bound, maxval=bound)
        params.append((w, b))
    return params


def mlp_reference(x, params):
    """Pure-JAX reference for correctness checking."""
    num_layers = len(params)
    y = x
    for i, (w, b) in enumerate(params):
        y = y @ w + b
        if i < num_layers - 1:
            y = jax.nn.relu(y)
    return y


if __name__ == "__main__":
    # Shapes consistent with the IoU-head MLP: input 32, hidden 32, output 4,
    # 3 layers, batch of 8 feature vectors.
    input_dim, hidden_dim, output_dim, num_layers = 32, 32, 4, 3
    batch = 8

    key = jax.random.PRNGKey(0)
    kx, kp = jax.random.split(key)
    x = jax.random.normal(kx, (batch, input_dim), jnp.float32)
    params = init_mlp_params(kp, input_dim, hidden_dim, output_dim, num_layers)

    out = mlp_forward(x, params)
    out = jax.block_until_ready(out)

    ref = mlp_reference(x, params)
    assert out.shape == (batch, output_dim), out.shape
    assert jnp.allclose(out, ref, atol=1e-5, rtol=1e-5), "mismatch vs reference"

    print("KERNEL_OK")
</pallas_src>

<mosaic_0001>
module attributes {stable_mosaic.version = 11 : i64} {
  func.func @_fused_mlp_kernel(%arg0: i32, %arg1: memref<8x32xf32, #tpu.memory_space<vmem>>, %arg2: memref<32x32xf32, #tpu.memory_space<vmem>>, %arg3: memref<1x32xf32, #tpu.memory_space<vmem>>, %arg4: memref<32x32xf32, #tpu.memory_space<vmem>>, %arg5: memref<1x32xf32, #tpu.memory_space<vmem>>, %arg6: memref<32x4xf32, #tpu.memory_space<vmem>>, %arg7: memref<1x4xf32, #tpu.memory_space<vmem>>, %arg8: memref<8x4xf32, #tpu.memory_space<vmem>>) attributes {dimension_semantics = [#tpu.dimension_semantics<parallel>], iteration_bounds = array<i64: 1>, scalar_prefetch = 0 : i64, scratch_operands = 0 : i64, tpu.core_type = #tpu.core_type<tc>, window_params = [{transform_indices = @transform_0, window_bounds = array<i64: 8, 32>}, {pipeline_mode = #tpu.pipeline_mode<synchronous>, transform_indices = @transform_1, window_bounds = array<i64: 32, 32>}, {pipeline_mode = #tpu.pipeline_mode<synchronous>, transform_indices = @transform_2, window_bounds = array<i64: 1, 32>}, {pipeline_mode = #tpu.pipeline_mode<synchronous>, transform_indices = @transform_3, window_bounds = array<i64: 32, 32>}, {pipeline_mode = #tpu.pipeline_mode<synchronous>, transform_indices = @transform_4, window_bounds = array<i64: 1, 32>}, {pipeline_mode = #tpu.pipeline_mode<synchronous>, transform_indices = @transform_5, window_bounds = array<i64: 32, 4>}, {pipeline_mode = #tpu.pipeline_mode<synchronous>, transform_indices = @transform_6, window_bounds = array<i64: 1, 4>}, {transform_indices = @transform_7, window_bounds = array<i64: 8, 4>}]} {
    %c0 = arith.constant 0 : index
    %c0_0 = arith.constant 0 : index
    %0 = vector.load %arg1[%c0, %c0_0] : memref<8x32xf32, #tpu.memory_space<vmem>>, vector<8x32xf32>
    %c0_1 = arith.constant 0 : index
    %c0_2 = arith.constant 0 : index
    %1 = vector.load %arg2[%c0_1, %c0_2] : memref<32x32xf32, #tpu.memory_space<vmem>>, vector<32x32xf32>
    %cst = arith.constant dense<0.000000e+00> : vector<8x32xf32>
    %2 = tpu.matmul %0, %1, %cst {dimension_numbers = #tpu.dot_dimension_numbers<[1], [0], [0], [1], [0, 0, 1, 1], [], []>} : vector<8x32xf32>, vector<32x32xf32>, vector<8x32xf32> -> vector<8x32xf32>
    %c0_3 = arith.constant 0 : index
    %c0_4 = arith.constant 0 : index
    %3 = vector.load %arg3[%c0_3, %c0_4] : memref<1x32xf32, #tpu.memory_space<vmem>>, vector<1x32xf32>
    %4 = vector.broadcast %3 : vector<1x32xf32> to vector<8x32xf32>
    %5 = arith.addf %2, %4 : vector<8x32xf32>
    %cst_5 = arith.constant 0.000000e+00 : f32
    %6 = vector.broadcast %cst_5 : f32 to vector<8x32xf32>
    %7 = arith.maximumf %5, %6 : vector<8x32xf32>
    %c0_6 = arith.constant 0 : index
    %c0_7 = arith.constant 0 : index
    %8 = vector.load %arg4[%c0_6, %c0_7] : memref<32x32xf32, #tpu.memory_space<vmem>>, vector<32x32xf32>
    %cst_8 = arith.constant dense<0.000000e+00> : vector<8x32xf32>
    %9 = tpu.matmul %7, %8, %cst_8 {dimension_numbers = #tpu.dot_dimension_numbers<[1], [0], [0], [1], [0, 0, 1, 1], [], []>} : vector<8x32xf32>, vector<32x32xf32>, vector<8x32xf32> -> vector<8x32xf32>
    %c0_9 = arith.constant 0 : index
    %c0_10 = arith.constant 0 : index
    %10 = vector.load %arg5[%c0_9, %c0_10] : memref<1x32xf32, #tpu.memory_space<vmem>>, vector<1x32xf32>
    %11 = vector.broadcast %10 : vector<1x32xf32> to vector<8x32xf32>
    %12 = arith.addf %9, %11 : vector<8x32xf32>
    %cst_11 = arith.constant 0.000000e+00 : f32
    %13 = vector.broadcast %cst_11 : f32 to vector<8x32xf32>
    %14 = arith.maximumf %12, %13 : vector<8x32xf32>
    %c0_12 = arith.constant 0 : index
    %c0_13 = arith.constant 0 : index
    %15 = vector.load %arg6[%c0_12, %c0_13] : memref<32x4xf32, #tpu.memory_space<vmem>>, vector<32x4xf32>
    %cst_14 = arith.constant dense<0.000000e+00> : vector<8x4xf32>
    %16 = tpu.matmul %14, %15, %cst_14 {dimension_numbers = #tpu.dot_dimension_numbers<[1], [0], [0], [1], [0, 0, 1, 1], [], []>} : vector<8x32xf32>, vector<32x4xf32>, vector<8x4xf32> -> vector<8x4xf32>
    %c0_15 = arith.constant 0 : index
    %c0_16 = arith.constant 0 : index
    %17 = vector.load %arg7[%c0_15, %c0_16] : memref<1x4xf32, #tpu.memory_space<vmem>>, vector<1x4xf32>
    %18 = vector.broadcast %17 : vector<1x4xf32> to vector<8x4xf32>
    %19 = arith.addf %16, %18 : vector<8x4xf32>
    %c0_17 = arith.constant 0 : index
    %c0_18 = arith.constant 0 : index
    %20 = vector.load %arg8[%c0_17, %c0_18] : memref<8x4xf32, #tpu.memory_space<vmem>>, vector<8x4xf32>
    tpu.vector_store %arg8[%c0_17, %c0_18], %19 {strides = array<i32>} : memref<8x4xf32, #tpu.memory_space<vmem>>, vector<8x4xf32>,
    return
  }
  func.func @transform_0(%arg0: i32) -> (i32, i32) {
    %c0_i32 = arith.constant 0 : i32
    %c0_i32_0 = arith.constant 0 : i32
    return %arg0, %c0_i32 : i32, i32
  }
  func.func @transform_1(%arg0: i32) -> (i32, i32) {
    %c0_i32 = arith.constant 0 : i32
    %c0_i32_0 = arith.constant 0 : i32
    %c0_i32_1 = arith.constant 0 : i32
    return %c0_i32, %c0_i32_0 : i32, i32
  }
  func.func @transform_2(%arg0: i32) -> (i32, i32) {
    %c0_i32 = arith.constant 0 : i32
    %c0_i32_0 = arith.constant 0 : i32
    %c0_i32_1 = arith.constant 0 : i32
    return %c0_i32, %c0_i32_0 : i32, i32
  }
  func.func @transform_3(%arg0: i32) -> (i32, i32) {
    %c0_i32 = arith.constant 0 : i32
    %c0_i32_0 = arith.constant 0 : i32
    %c0_i32_1 = arith.constant 0 : i32
    return %c0_i32, %c0_i32_0 : i32, i32
  }
  func.func @transform_4(%arg0: i32) -> (i32, i32) {
    %c0_i32 = arith.constant 0 : i32
    %c0_i32_0 = arith.constant 0 : i32
    %c0_i32_1 = arith.constant 0 : i32
    return %c0_i32, %c0_i32_0 : i32, i32
  }
  func.func @transform_5(%arg0: i32) -> (i32, i32) {
    %c0_i32 = arith.constant 0 : i32
    %c0_i32_0 = arith.constant 0 : i32
    %c0_i32_1 = arith.constant 0 : i32
    return %c0_i32, %c0_i32_0 : i32, i32
  }
  func.func @transform_6(%arg0: i32) -> (i32, i32) {
    %c0_i32 = arith.constant 0 : i32
    %c0_i32_0 = arith.constant 0 : i32
    %c0_i32_1 = arith.constant 0 : i32
    return %c0_i32, %c0_i32_0 : i32, i32
  }
  func.func @transform_7(%arg0: i32) -> (i32, i32) {
    %c0_i32 = arith.constant 0 : i32
    %c0_i32_0 = arith.constant 0 : i32
    return %arg0, %c0_i32 : i32, i32
  }
}

</mosaic_0001>

<llo_original>
// kernel: tpu_custom_call.1
$region0: #{tpu_custom_call.1}
  #allocation0 [shape = 'u32[]', space=smem, size = 0x4, offset = 0x4, fixed_abs, tag = 'smem constant byte address 0x4 - core index']
  #allocation1 [shape = 'u32[144,128]{1,0:T(1,128)}', space=vmem, size = 0x12000, scoped, tag = 'internal scratch']
  %s0 = inlined_call_operand.hbm [shape: f32[8,32], index: 0, kind: input, shape index: {}]
  %s1 = inlined_call_operand.vmem [shape: f32[32,32], index: 1, kind: input, shape index: {}]
  %s2 = inlined_call_operand.vmem [shape: f32[1,32], index: 2, kind: input, shape index: {}]
  %s3 = inlined_call_operand.hbm [shape: f32[32,32], index: 3, kind: input, shape index: {}]
  %s4 = inlined_call_operand.vmem [shape: f32[1,32], index: 4, kind: input, shape index: {}]
  %s5 = inlined_call_operand.vmem [shape: f32[32,4], index: 5, kind: input, shape index: {}]
  %s6 = inlined_call_operand.vmem [shape: f32[1,4], index: 6, kind: input, shape index: {}]
  %s7 = inlined_call_operand.vmem [shape: f32[8,4], index: 7, kind: output, shape index: {}]
  %s8 = sld [smem:[#allocation0]]
  $region46: #{tpu_custom_call.1} parent=0
    _
  %s10 = ssub.s32 1, %s8
  %s11 = scalar_select 0, %s10, %s8
  $region1: #{tpu_custom_call.1} parent=0
    #allocation2 [shape = 'u8[4096]{0}', space=vmem, size = 0x1000, scoped, tag = 'input window, operand 0, single buffered']
    #allocation3 [shape = 's32[1]{0}', space=sflag, size = 0x4, scoped, tag = 'scoped memory for tpu_custom_call.1']
    #allocation4 [shape = 'u8[16384]{0}', space=vmem, size = 0x4000, scoped, tag = 'input window, operand 3, single buffered']
    #allocation5 [shape = 's32[1]{0}', space=sflag, size = 0x4, scoped, tag = 'scoped memory for tpu_custom_call.1']
    %12 = vsyncpa [#allocation3], 0
    %13 = vsyncpa [#allocation5], 0
    // Predicated region
    $region2: #{tpu_custom_call.1} parent=1 // pred_check
      _
    $region3: #{tpu_custom_call.1} parent=1 // pred_check_branch
      %15 = sbr.rel (0) target = $region5
    $region4: #{tpu_custom_call.1} parent=1 // pred_region
      %s17 = ssub.s32 128, 128
      %18 = vsyncadd [#allocation3], %s17
      %s20 = sshll.u32 [#allocation2], 4
      %s21 = int_to_ptr.vmem [resolvable:$true] %s20
      %23 = dma.hbm_to_vmem [thread:$0]  %s0, 128, %s21, [#allocation3]
    $region5: #{tpu_custom_call.1} parent=1 // pred_fallthru
      _
    // Predicated region
    $region6: #{tpu_custom_call.1} parent=1 // pred_check
      _
    $region7: #{tpu_custom_call.1} parent=1 // pred_check_branch
      %25 = sbr.rel (0) target = $region9
    $region8: #{tpu_custom_call.1} parent=1 // pred_region
      _
    $region9: #{tpu_custom_call.1} parent=1 // pred_fallthru
      _
    // Predicated region
    $region10: #{tpu_custom_call.1} parent=1 // pred_check
      _
    $region11: #{tpu_custom_call.1} parent=1 // pred_check_branch
      %27 = sbr.rel (0) target = $region13
    $region12: #{tpu_custom_call.1} parent=1 // pred_region
      _
    $region13: #{tpu_custom_call.1} parent=1 // pred_fallthru
      _
    // Predicated region
    $region14: #{tpu_custom_call.1} parent=1 // pred_check
      _
    $region15: #{tpu_custom_call.1} parent=1 // pred_check_branch
      %29 = sbr.rel (0) target = $region17
    $region16: #{tpu_custom_call.1} parent=1 // pred_region
      %s31 = ssub.s32 512, 512
      %32 = vsyncadd [#allocation5], %s31
      %s33 = sshll.u32 [#allocation4], 4
      %s34 = int_to_ptr.vmem [resolvable:$true] %s33
      %39 = dma.hbm_to_vmem [thread:$0]  %s3, 512, %s34, [#allocation5], 128, 128, 8
    $region17: #{tpu_custom_call.1} parent=1 // pred_fallthru
      _
    // Predicated region
    $region18: #{tpu_custom_call.1} parent=1 // pred_check
      _
    $region19: #{tpu_custom_call.1} parent=1 // pred_check_branch
      %41 = sbr.rel (0) target = $region21
    $region20: #{tpu_custom_call.1} parent=1 // pred_region
      _
    $region21: #{tpu_custom_call.1} parent=1 // pred_fallthru
      _
    // Predicated region
    $region22: #{tpu_custom_call.1} parent=1 // pred_check
      _
    $region23: #{tpu_custom_call.1} parent=1 // pred_check_branch
      %43 = sbr.rel (0) target = $region25
    $region24: #{tpu_custom_call.1} parent=1 // pred_region
      _
    $region25: #{tpu_custom_call.1} parent=1 // pred_fallthru
      _
    // Predicated region
    $region26: #{tpu_custom_call.1} parent=1 // pred_check
      _
    $region27: #{tpu_custom_call.1} parent=1 // pred_check_branch
      %45 = sbr.rel (0) target = $region29
    $region28: #{tpu_custom_call.1} parent=1 // pred_region
      _
    $region29: #{tpu_custom_call.1} parent=1 // pred_fallthru
      _
    // Predicated region
    $region30: #{tpu_custom_call.1} parent=1 // pred_check
      _
    $region31: #{tpu_custom_call.1} parent=1 // pred_check_branch
      %47 = sbr.rel (0) target = $region33
    $region32: #{tpu_custom_call.1} parent=1 // pred_region
      %48 = dma.done [#allocation3], 128
    $region33: #{tpu_custom_call.1} parent=1 // pred_fallthru
      _
    // Predicated region
    $region34: #{tpu_custom_call.1} parent=1 // pred_check
      _
    $region35: #{tpu_custom_call.1} parent=1 // pred_check_branch
      %50 = sbr.rel (0) target = $region37
    $region36: #{tpu_custom_call.1} parent=1 // pred_region
      %51 = dma.done [#allocation5], 512
    $region37: #{tpu_custom_call.1} parent=1 // pred_fallthru
      _
    %v52 = vld [vmem:[#allocation2] sm:$0xff]
    %v53 = vld [vmem:[%s1] sm:$0xff]
    %v54 = vld [vmem:[%s1 + $0x8] sm:$0xff]
    %v55 = vld [vmem:[%s1 + $0x10] sm:$0xff]
    %v56 = vld [vmem:[%s1 + $0x18] sm:$0xff]
    %v57 = vld [vmem:[%s2] sm:$0x1]
    %v59 = vlaneseq
    %v60 = vshrl.u32 %v59, 7
    %v61 = vsub.s32 0, %v60
    %v62 = vrot.slane %v57, %v61
    %vm64 = vcmask 261120
    %v66 = vsel %vm64, %v52, 0
    %68 = vmatprep.subr.mxu0 0.0
    %69 = vmatpush1.msra.mxu0 0.0
    %70 = vmatprep.subr.mxu0 0.0
    %71 = vmatpush1.msra.mxu0 0.0
    %72 = vmatprep.subr.mxu0 0.0
    %73 = vmatpush1.msra.mxu0 0.0
    %74 = vmatprep.subr.mxu0 0.0
    %75 = vmatpush1.msra.mxu0 0.0
    %76 = vmatprep.subr.mxu0 0.0
    %77 = vmatpush1.msra.mxu0 0.0
    %78 = vmatprep.subr.mxu0 0.0
    %79 = vmatpush1.msra.mxu0 0.0
    %80 = vmatprep.subr.mxu0 0.0
    %81 = vmatpush1.msra.mxu0 0.0
    %82 = vmatprep.subr.mxu0 0.0
    %83 = vmatpush1.msra.mxu0 0.0
    %84 = vmatprep.subr.mxu0 0.0
    %85 = vmatpush1.msra.mxu0 0.0
    %86 = vmatprep.subr.mxu0 0.0
    %87 = vmatpush1.msra.mxu0 0.0
    %88 = vmatprep.subr.mxu0 0.0
    %89 = vmatpush1.msra.mxu0 0.0
    %90 = vmatprep.subr.mxu0 0.0
    %91 = vmatpush1.msra.mxu0 0.0
    %92 = vmatprep.subr.mxu0 0.0
    %93 = vmatpush1.msra.mxu0 %v56
    %94 = vmatprep.subr.mxu0 0.0
    %95 = vmatpush1.msra.mxu0 %v55
    %96 = vmatprep.subr.mxu0 0.0
    %97 = vmatpush1.msra.mxu0 %v54
    %98 = vmatprep.subr.mxu0 0.0
    %99 = vmatpush1.msra.mxu0 %v53
    %100 = vmatprep.subr.mxu0 0.0
    %101 = vmatpush2.msra.mxu0 0.0
    %102 = vmatprep.subr.mxu0 0.0
    %103 = vmatpush2.msra.mxu0 0.0
    %104 = vmatprep.subr.mxu0 0.0
    %105 = vmatpush2.msra.mxu0 0.0
    %106 = vmatprep.subr.mxu0 0.0
    %107 = vmatpush2.msra.mxu0 0.0
    %108 = vmatprep.subr.mxu0 0.0
    %109 = vmatpush2.msra.mxu0 0.0
    %110 = vmatprep.subr.mxu0 0.0
    %111 = vmatpush2.msra.mxu0 0.0
    %112 = vmatprep.subr.mxu0 0.0
    %113 = vmatpush2.msra.mxu0 0.0
    %114 = vmatprep.subr.mxu0 0.0
    %115 = vmatpush2.msra.mxu0 0.0
    %116 = vmatprep.subr.mxu0 0.0
    %117 = vmatpush2.msra.mxu0 0.0
    %118 = vmatprep.subr.mxu0 0.0
    %119 = vmatpush2.msra.mxu0 0.0
    %120 = vmatprep.subr.mxu0 0.0
    %121 = vmatpush2.msra.mxu0 0.0
    %122 = vmatprep.subr.mxu0 0.0
    %123 = vmatpush2.msra.mxu0 0.0
    %124 = vmatprep.subr.mxu0 0.0
    %125 = vmatpush2.msra.mxu0 0.0
    %126 = vmatprep.subr.mxu0 0.0
    %127 = vmatpush2.msra.mxu0 0.0
    %128 = vmatprep.subr.mxu0 0.0
    %129 = vmatpush2.msra.mxu0 0.0
    %130 = vmatprep.subr.mxu0 0.0
    %131 = vmatpush2.msra.mxu0 0.0
    %132 = vmatprep.mubr.f32.mxu0 0.0
    %133 = vmatmul.mubr.f32.gmra.mxu0 %v66
    %v134 = vpop.f32.mrf.mxu0
    %v135 = vadd.f32 %v62, %v134
    %v136 = vpop.f32.mrf.mxu0
    %137 = vdwg.mxu0
    %v138 = vmax.f32 %v135, 0.0
    %v139 = vld [vmem:[#allocation4] sm:$0xff]
    %v140 = vld [vmem:[#allocation4 + $0x8] sm:$0xff]
    %v141 = vld [vmem:[#allocation4 + $0x10] sm:$0xff]
    %v142 = vld [vmem:[#allocation4 + $0x18] sm:$0xff]
    %v143 = vld [vmem:[%s4] sm:$0x1]
    %v145 = vlaneseq
    %v146 = vshrl.u32 %v145, 7
    %v147 = vsub.s32 0, %v146
    %v148 = vrot.slane %v143, %v147
    %v151 = vsel %vm64, %v138, 0
    %153 = vmatprep.subr.mxu0 0.0
    %154 = vmatpush1.msra.mxu0 0.0
    %155 = vmatprep.subr.mxu0 0.0
    %156 = vmatpush1.msra.mxu0 0.0
    %157 = vmatprep.subr.mxu0 0.0
    %158 = vmatpush1.msra.mxu0 0.0
    %159 = vmatprep.subr.mxu0 0.0
    %160 = vmatpush1.msra.mxu0 0.0
    %161 = vmatprep.subr.mxu0 0.0
    %162 = vmatpush1.msra.mxu0 0.0
    %163 = vmatprep.subr.mxu0 0.0
    %164 = vmatpush1.msra.mxu0 0.0
    %165 = vmatprep.subr.mxu0 0.0
    %166 = vmatpush1.msra.mxu0 0.0
    %167 = vmatprep.subr.mxu0 0.0
    %168 = vmatpush1.msra.mxu0 0.0
    %169 = vmatprep.subr.mxu0 0.0
    %170 = vmatpush1.msra.mxu0 0.0
    %171 = vmatprep.subr.mxu0 0.0
    %172 = vmatpush1.msra.mxu0 0.0
    %173 = vmatprep.subr.mxu0 0.0
    %174 = vmatpush1.msra.mxu0 0.0
    %175 = vmatprep.subr.mxu0 0.0
    %176 = vmatpush1.msra.mxu0 0.0
    %177 = vmatprep.subr.mxu0 0.0
    %178 = vmatpush1.msra.mxu0 %v142
    %179 = vmatprep.subr.mxu0 0.0
    %180 = vmatpush1.msra.mxu0 %v141
    %181 = vmatprep.subr.mxu0 0.0
    %182 = vmatpush1.msra.mxu0 %v140
    %183 = vmatprep.subr.mxu0 0.0
    %184 = vmatpush1.msra.mxu0 %v139
    %185 = vmatprep.subr.mxu0 0.0
    %186 = vmatpush2.msra.mxu0 0.0
    %187 = vmatprep.subr.mxu0 0.0
    %188 = vmatpush2.msra.mxu0 0.0
    %189 = vmatprep.subr.mxu0 0.0
    %190 = vmatpush2.msra.mxu0 0.0
    %191 = vmatprep.subr.mxu0 0.0
    %192 = vmatpush2.msra.mxu0 0.0
    %193 = vmatprep.subr.mxu0 0.0
    %194 = vmatpush2.msra.mxu0 0.0
    %195 = vmatprep.subr.mxu0 0.0
    %196 = vmatpush2.msra.mxu0 0.0
    %197 = vmatprep.subr.mxu0 0.0
    %198 = vmatpush2.msra.mxu0 0.0
    %199 = vmatprep.subr.mxu0 0.0
    %200 = vmatpush2.msra.mxu0 0.0
    %201 = vmatprep.subr.mxu0 0.0
    %202 = vmatpush2.msra.mxu0 0.0
    %203 = vmatprep.subr.mxu0 0.0
    %204 = vmatpush2.msra.mxu0 0.0
    %205 = vmatprep.subr.mxu0 0.0
    %206 = vmatpush2.msra.mxu0 0.0
    %207 = vmatprep.subr.mxu0 0.0
    %208 = vmatpush2.msra.mxu0 0.0
    %209 = vmatprep.subr.mxu0 0.0
    %210 = vmatpush2.msra.mxu0 0.0
    %211 = vmatprep.subr.mxu0 0.0
    %212 = vmatpush2.msra.mxu0 0.0
    %213 = vmatprep.subr.mxu0 0.0
    %214 = vmatpush2.msra.mxu0 0.0
    %215 = vmatprep.subr.mxu0 0.0
    %216 = vmatpush2.msra.mxu0 0.0
    %217 = vmatprep.mubr.f32.mxu0 0.0
    %218 = vmatmul.mubr.f32.gmra.mxu0 %v151
    %v219 = vpop.f32.mrf.mxu0
    %v220 = vadd.f32 %v148, %v219
    %v221 = vpop.f32.mrf.mxu0
    %222 = vdwg.mxu0
    %v223 = vmax.f32 %v220, 0.0
    %v224 = vld [vmem:[%s5] sm:$0xff]
    %v225 = vld [vmem:[%s5 + $0x8] sm:$0xff]
    %v226 = vld [vmem:[%s5 + $0x10] sm:$0xff]
    %v227 = vld [vmem:[%s5 + $0x18] sm:$0xff]
    %v228 = vld [vmem:[%s6] sm:$0x1]
    %v230 = vlaneseq
    %v231 = vshrl.u32 %v230, 7
    %v232 = vsub.s32 0, %v231
    %v233 = vrot.slane %v228, %v232
    %v236 = vsel %vm64, %v223, 0
    %238 = vmatprep.subr.mxu0 0.0
    %239 = vmatpush1.msra.mxu0 0.0
    %240 = vmatprep.subr.mxu0 0.0
    %241 = vmatpush1.msra.mxu0 0.0
    %242 = vmatprep.subr.mxu0 0.0
    %243 = vmatpush1.msra.mxu0 0.0
    %244 = vmatprep.subr.mxu0 0.0
    %245 = vmatpush1.msra.mxu0 0.0
    %246 = vmatprep.subr.mxu0 0.0
    %247 = vmatpush1.msra.mxu0 0.0
    %248 = vmatprep.subr.mxu0 0.0
    %249 = vmatpush1.msra.mxu0 0.0
    %250 = vmatprep.subr.mxu0 0.0
    %251 = vmatpush1.msra.mxu0 0.0
    %252 = vmatprep.subr.mxu0 0.0
    %253 = vmatpush1.msra.mxu0 0.0
    %254 = vmatprep.subr.mxu0 0.0
    %255 = vmatpush1.msra.mxu0 0.0
    %256 = vmatprep.subr.mxu0 0.0
    %257 = vmatpush1.msra.mxu0 0.0
    %258 = vmatprep.subr.mxu0 0.0
    %259 = vmatpush1.msra.mxu0 0.0
    %260 = vmatprep.subr.mxu0 0.0
    %261 = vmatpush1.msra.mxu0 0.0
    %262 = vmatprep.subr.mxu0 0.0
    %263 = vmatpush1.msra.mxu0 %v227
    %264 = vmatprep.subr.mxu0 0.0
    %265 = vmatpush1.msra.mxu0 %v226
    %266 = vmatprep.subr.mxu0 0.0
    %267 = vmatpush1.msra.mxu0 %v225
    %268 = vmatprep.subr.mxu0 0.0
    %269 = vmatpush1.msra.mxu0 %v224
    %270 = vmatprep.subr.mxu0 0.0
    %271 = vmatpush2.msra.mxu0 0.0
    %272 = vmatprep.subr.mxu0 0.0
    %273 = vmatpush2.msra.mxu0 0.0
    %274 = vmatprep.subr.mxu0 0.0
    %275 = vmatpush2.msra.mxu0 0.0
    %276 = vmatprep.subr.mxu0 0.0
    %277 = vmatpush2.msra.mxu0 0.0
    %278 = vmatprep.subr.mxu0 0.0
    %279 = vmatpush2.msra.mxu0 0.0
    %280 = vmatprep.subr.mxu0 0.0
    %281 = vmatpush2.msra.mxu0 0.0
    %282 = vmatprep.subr.mxu0 0.0
    %283 = vmatpush2.msra.mxu0 0.0
    %284 = vmatprep.subr.mxu0 0.0
    %285 = vmatpush2.msra.mxu0 0.0
    %286 = vmatprep.subr.mxu0 0.0
    %287 = vmatpush2.msra.mxu0 0.0
    %288 = vmatprep.subr.mxu0 0.0
    %289 = vmatpush2.msra.mxu0 0.0
    %290 = vmatprep.subr.mxu0 0.0
    %291 = vmatpush2.msra.mxu0 0.0
    %292 = vmatprep.subr.mxu0 0.0
    %293 = vmatpush2.msra.mxu0 0.0
    %294 = vmatprep.subr.mxu0 0.0
    %295 = vmatpush2.msra.mxu0 0.0
    %296 = vmatprep.subr.mxu0 0.0
    %297 = vmatpush2.msra.mxu0 0.0
    %298 = vmatprep.subr.mxu0 0.0
    %299 = vmatpush2.msra.mxu0 0.0
    %300 = vmatprep.subr.mxu0 0.0
    %301 = vmatpush2.msra.mxu0 0.0
    %302 = vmatprep.mubr.f32.mxu0 0.0
    %303 = vmatmul.mubr.f32.gmra.mxu0 %v236
    %v304 = vpop.f32.mrf.mxu0
    %v305 = vadd.f32 %v233, %v304
    %v306 = vpop.f32.mrf.mxu0
    %307 = vdwg.mxu0
    %vm308 = vcmask 31744
    %309 = vst.msk [vmem:[%s7] sm:$0xff] %vm308, %v305
    // Predicated region
    $region38: #{tpu_custom_call.1} parent=1 // pred_check
      _
    $region39: #{tpu_custom_call.1} parent=1 // pred_check_branch
      %311 = sbr.rel (0) target = $region41
    $region40: #{tpu_custom_call.1} parent=1 // pred_region
      _
    $region41: #{tpu_custom_call.1} parent=1 // pred_fallthru
      _
    // Predicated region
    $region42: #{tpu_custom_call.1} parent=1 // pred_check
      _
    $region43: #{tpu_custom_call.1} parent=1 // pred_check_branch
      %313 = sbr.rel (0) target = $region45
    $region44: #{tpu_custom_call.1} parent=1 // pred_region
      _
    $region45: #{tpu_custom_call.1} parent=1 // pred_fallthru
      _
    %314 = vsyncpa [#allocation3], 1
    %315 = vsyncpa [#allocation5], 1

</llo_original>
